<compile_context>
chip_gen: v5e
topology: v5e:2x2
jax: 0.10.0
libtpu: 0.0.40
codegen_flags: <defaults>
</compile_context>

<pallas_src>
import functools

import numpy as np
import jax
import jax.numpy as jnp
from jax.experimental import pallas as pl
from jax.experimental.pallas import tpu as pltpu


STREAM_ROW_TILE = 2048      # 128-lane rows per grid step, streaming paths
GATHER_ROW_TILE = 1024      # cap for the one-hot gather path (onehot grows with tile)
SMALL_TABLE_ROWS = 512      # in-kernel gather only when pack * max_seq_len <= this
VMEM_BLOCK_BUDGET = 12 * 1024 * 1024   # per buffer set (x2 for double buffering)

_dot_hi = functools.partial(jnp.dot, preferred_element_type=jnp.float32,
                            precision=jax.lax.Precision.HIGHEST)


def make_rope_tables(theta: float, d_k: int, max_seq_len: int):
    """cos/sin tables of shape (max_seq_len, d_k); each frequency duplicated over
    its (2k, 2k+1) lane pair.  Built in float64, cast to float32 once."""
    pos = np.arange(max_seq_len, dtype=np.float64)[:, None]          # (L, 1)
    k = np.arange(d_k // 2, dtype=np.float64)[None, :]               # (1, d_k/2)
    ang = pos * theta ** (-2.0 * k / d_k)                            # (L, d_k/2)
    cos = np.repeat(np.cos(ang), 2, axis=-1).astype(np.float32)      # (L, d_k)
    sin = np.repeat(np.sin(ang), 2, axis=-1).astype(np.float32)      # (L, d_k)
    return jnp.asarray(cos), jnp.asarray(sin)


def _pack_params(d_k: int, seq_len: int):
    """Tokens packed per 128-lane row.  The pack is reduced until it divides the
    sequence length so the wrapper never has to jnp.pad (copy) x."""
    pack = 128 // d_k if (d_k < 128 and 128 % d_k == 0) else 1
    while pack > 1 and seq_len % pack:
        pack //= 2
    return pack, pack * d_k


def _swap_matrix(width: int, dtype):
    """Antisymmetric pairwise swap: (x @ M)[2k] = -x[2k+1], (x @ M)[2k+1] = x[2k].
    Entries are 0/+-1, so it is exact in bf16.  Pairs never straddle packed-token
    boundaries because d_k is even."""
    block = np.array([[0.0, 1.0], [-1.0, 0.0]], dtype=np.float32)
    m = np.kron(np.eye(width // 2, dtype=np.float32), block)
    return jnp.asarray(m, dtype=dtype)


def _pick_tile_rows(n_rows, batch, width, x_bytes, cs_bytes, default_cap):
    """Largest row tile that (a) fits the VMEM budget, (b) respects the per-path
    cap, and (c) leaves >= 2 grid steps when B == 1 (v7x dual TensorCore)."""
    per_row = 2 * width * x_bytes + 2 * width * cs_bytes + 16
    cap = max(8, (VMEM_BLOCK_BUDGET // per_row) // 8 * 8)
    cap = min(cap, default_cap)
    if batch == 1:
        cap = min(cap, max(8, ((n_rows + 1) // 2 + 7) // 8 * 8))
    return n_rows if n_rows <= cap else cap


def _rope_stream_kernel(x_ref, cs_ref, swap_ref, o_ref):
    """One (rows, width) tile; cs_ref holds the matching rows of concat(cos|sin)."""
    x = x_ref[...]
    w = x.shape[-1]
    x_swap = _dot_hi(x, swap_ref[...])              # (-x[2k+1], +x[2k]) pairs, MXU
    xf = x.astype(jnp.float32)
    cos = cs_ref[:, :w].astype(jnp.float32)
    sin = cs_ref[:, w:].astype(jnp.float32)
    o_ref[...] = (xf * cos + x_swap * sin).astype(o_ref.dtype)


def _rope_gather_kernel(g_ref, x_ref, cs_ref, swap_ref, o_ref):
    """Small-table path: gather per-token cos|sin rows from the VMEM-resident
    block-diagonal table with a single fused one-hot MXU matmul, then rotate."""
    x = x_ref[...]
    rows, w = x.shape
    tab_rows = cs_ref.shape[0]
    g = g_ref[...]                                   # (rows, pack) table row ids
    col = jax.lax.broadcasted_iota(jnp.int32, (rows, tab_rows), 1)
    hit = col == g[:, 0:1]
    for t in range(1, g.shape[1]):                   # static unroll; slots occupy
        hit = hit | (col == g[:, t:t + 1])           # disjoint column blocks
    onehot = hit.astype(jnp.float32)                 # single cast (VALU trim)
    cs = _dot_hi(onehot, cs_ref[...])                # fused cos|sin gather (rows, 2w)
    x_swap = _dot_hi(x, swap_ref[...])
    xf = x.astype(jnp.float32)
    o_ref[...] = (xf * cs[:, :w] + x_swap * cs[:, w:]).astype(o_ref.dtype)


def rope_forward(x, token_positions, cos_table, sin_table, *,
                 contiguous_positions=False, gather_in_kernel=None):
    """
    x:               (B, S, d_k) float32 / bfloat16
    token_positions: (B, S) int  (ignored when contiguous_positions=True, which
                                  asserts token_positions[b, s] == s)
    cos/sin_table:   (max_seq_len, d_k) float32 from make_rope_tables
    returns          (B, S, d_k), same dtype as x
    """
    B, S, D = x.shape
    assert D % 2 == 0, "RoPE requires an even head dimension"
    L = cos_table.shape[0]

    pack, width = _pack_params(D, S)
    n_rows = S // pack
    x_rows = x.reshape(B, n_rows, width)             # lane-dense, layout-only reshape

    cs_dtype = x.dtype if x.dtype == jnp.bfloat16 else jnp.float32
    swap = _swap_matrix(width, x.dtype if x.dtype == jnp.bfloat16 else jnp.float32)

    if gather_in_kernel is None:
        gather_in_kernel = (not contiguous_positions) and pack * L <= SMALL_TABLE_ROWS
    default_cap = (GATHER_ROW_TILE if (gather_in_kernel and not contiguous_positions)
                   else STREAM_ROW_TILE)
    tile_rows = _pick_tile_rows(n_rows, B, width, x.dtype.itemsize,
                                jnp.dtype(cs_dtype).itemsize, default_cap)
    grid = (pl.cdiv(n_rows, tile_rows), B)           # row tiles outer, batch inner

    x_spec = pl.BlockSpec((None, tile_rows, width), lambda r, b: (b, r, 0))
    resident = lambda arr: pl.BlockSpec(arr.shape, lambda r, b: (0, 0))
    out_shape = jax.ShapeDtypeStruct((B, n_rows, width), x.dtype)
    cparams = pltpu.CompilerParams(
        dimension_semantics=("parallel", "parallel"),
        vmem_limit_bytes=32 * 1024 * 1024,
    )

    if contiguous_positions:
        # Fast path: positions == arange(S).  Stream the packed concat(cos|sin)
        # table rows with the same row index_map as x; batch is the innermost
        # grid axis so the table block is not re-fetched across b.
        assert S <= L, "contiguous path needs seq_len <= max_seq_len"
        cs = jnp.concatenate(
            [cos_table[:S].reshape(n_rows, width),
             sin_table[:S].reshape(n_rows, width)], axis=-1).astype(cs_dtype)
        out = pl.pallas_call(
            _rope_stream_kernel,
            out_shape=out_shape,
            grid_spec=pl.GridSpec(
                grid=grid,
                in_specs=[x_spec,
                          pl.BlockSpec((tile_rows, 2 * width), lambda r, b: (r, 0)),
                          resident(swap)],
                out_specs=x_spec,
            ),
            compiler_params=cparams,
        )(x_rows, cs, swap)
        return out.reshape(B, S, D)

    pos = jnp.clip(token_positions.astype(jnp.int32), 0, L - 1)

    if gather_in_kernel:
        # Arbitrary positions, small table: VMEM-resident block-diagonal
        # concat(cos|sin) table (DMA'd once) + fused one-hot MXU gather.
        slot_off = (jnp.arange(S, dtype=jnp.int32) % pack) * L
        g = (pos + slot_off[None, :]).reshape(B, n_rows, pack)
        eye = jnp.eye(pack, dtype=jnp.float32)
        cs_big = jnp.concatenate(
            [jnp.kron(eye, cos_table), jnp.kron(eye, sin_table)], axis=-1)
        out = pl.pallas_call(
            _rope_gather_kernel,
            out_shape=out_shape,
            grid_spec=pl.GridSpec(
                grid=grid,
                in_specs=[pl.BlockSpec((None, tile_rows, pack), lambda r, b: (b, r, 0)),
                          x_spec,
                          resident(cs_big),
                          resident(swap)],
                out_specs=x_spec,
            ),
            compiler_params=cparams,
        )(g, x_rows, cs_big, swap)
    else:
        # Arbitrary positions, large table: gather packed cos|sin rows in XLA and
        # stream a single fused block alongside x, carried at the activation dtype.
        cs = jnp.concatenate(
            [cos_table[pos].reshape(B, n_rows, width),
             sin_table[pos].reshape(B, n_rows, width)], axis=-1).astype(cs_dtype)
        out = pl.pallas_call(
            _rope_stream_kernel,
            out_shape=out_shape,
            grid_spec=pl.GridSpec(
                grid=grid,
                in_specs=[x_spec,
                          pl.BlockSpec((None, tile_rows, 2 * width), lambda r, b: (b, r, 0)),
                          resident(swap)],
                out_specs=x_spec,
            ),
            compiler_params=cparams,
        )(x_rows, cs, swap)

    return out.reshape(B, S, D)


def _reference_numpy(x, token_positions, theta, d_k, max_seq_len):
    """Faithful reproduction of the PyTorch module: block-diag matmul table."""
    R = np.zeros((max_seq_len, d_k, d_k), dtype=np.float64)
    for i in range(max_seq_len):
        for k in range(d_k // 2):
            ang = i / theta ** (2 * k / d_k)
            c, s = np.cos(ang), np.sin(ang)
            R[i, 2 * k, 2 * k] = c
            R[i, 2 * k, 2 * k + 1] = -s
            R[i, 2 * k + 1, 2 * k] = s
            R[i, 2 * k + 1, 2 * k + 1] = c
    Rg = R[np.asarray(token_positions)]                               # (B,S,D,D)
    out = np.einsum("bsij,bsj->bsi", Rg, np.asarray(x, dtype=np.float64))
    return out.astype(np.float32)


if __name__ == "__main__":
    key = jax.random.PRNGKey(0)

    # Config 1: d_k=32 exercises lane packing (4 tokens per 128-lane row) and all
    # three paths: in-kernel gather, XLA-gather fallback, contiguous streaming.
    theta, d_k, L, B, S = 10000.0, 32, 16, 2, 8
    kx, kp, key = jax.random.split(key, 3)
    x = jax.random.normal(kx, (B, S, d_k), dtype=jnp.float32)
    pos = jax.random.randint(kp, (B, S), 0, L, dtype=jnp.int32)
    cos_t, sin_t = make_rope_tables(theta, d_k, L)

    ref = _reference_numpy(x, pos, theta, d_k, L)
    out_g = jax.block_until_ready(
        rope_forward(x, pos, cos_t, sin_t, gather_in_kernel=True))
    out_f = jax.block_until_ready(
        rope_forward(x, pos, cos_t, sin_t, gather_in_kernel=False))
    np.testing.assert_allclose(np.asarray(out_g), ref, rtol=1e-3, atol=1e-3)
    np.testing.assert_allclose(np.asarray(out_f), ref, rtol=1e-3, atol=1e-3)

    pos_c = jnp.broadcast_to(jnp.arange(S, dtype=jnp.int32), (B, S))
    ref_c = _reference_numpy(x, pos_c, theta, d_k, L)
    out_c = jax.block_until_ready(
        rope_forward(x, pos_c, cos_t, sin_t, contiguous_positions=True))
    np.testing.assert_allclose(np.asarray(out_c), ref_c, rtol=1e-3, atol=1e-3)

    # Config 2: d_k=128 (pack=1), B=1, S=20 -> multiple row tiles with a partial
    # edge block (masked writes) and the B==1 dual-TensorCore row-tile split.
    theta2, d_k2, L2, B2, S2 = 10000.0, 128, 32, 1, 20
    kx2, kp2, key = jax.random.split(key, 3)
    x2 = jax.random.normal(kx2, (B2, S2, d_k2), dtype=jnp.float32)
    pos2 = jax.random.randint(kp2, (B2, S2), 0, L2, dtype=jnp.int32)
    cos_t2, sin_t2 = make_rope_tables(theta2, d_k2, L2)

    ref2 = _reference_numpy(x2, pos2, theta2, d_k2, L2)
    out2 = jax.block_until_ready(rope_forward(x2, pos2, cos_t2, sin_t2))
    np.testing.assert_allclose(np.asarray(out2), ref2, rtol=1e-3, atol=1e-3)

    pos2_c = jnp.broadcast_to(jnp.arange(S2, dtype=jnp.int32), (B2, S2))
    ref2_c = _reference_numpy(x2, pos2_c, theta2, d_k2, L2)
    out2_c = jax.block_until_ready(
        rope_forward(x2, pos2_c, cos_t2, sin_t2, contiguous_positions=True))
    np.testing.assert_allclose(np.asarray(out2_c), ref2_c, rtol=1e-3, atol=1e-3)

    print("KERNEL_OK")
</pallas_src>

<mosaic_0001>
module attributes {stable_mosaic.version = 11 : i64} {
  func.func @_rope_gather_kernel(%arg0: i32, %arg1: i32, %arg2: memref<1x2x4xi32, #tpu.memory_space<vmem>>, %arg3: memref<1x2x128xf32, #tpu.memory_space<vmem>>, %arg4: memref<64x256xf32, #tpu.memory_space<vmem>>, %arg5: memref<128x128xf32, #tpu.memory_space<vmem>>, %arg6: memref<1x2x128xf32, #tpu.memory_space<vmem>>) attributes {dimension_semantics = [#tpu.dimension_semantics<parallel>, #tpu.dimension_semantics<parallel>], iteration_bounds = array<i64: 1, 2>, scalar_prefetch = 0 : i64, scratch_operands = 0 : i64, tpu.core_type = #tpu.core_type<tc>, window_params = [{transform_indices = @transform_0, window_bounds = array<i64: 1, 2, 4>}, {transform_indices = @transform_1, window_bounds = array<i64: 1, 2, 128>}, {pipeline_mode = #tpu.pipeline_mode<synchronous>, transform_indices = @transform_2, window_bounds = array<i64: 64, 256>}, {pipeline_mode = #tpu.pipeline_mode<synchronous>, transform_indices = @transform_3, window_bounds = array<i64: 128, 128>}, {transform_indices = @transform_4, window_bounds = array<i64: 1, 2, 128>}]} {
    %c0 = arith.constant 0 : index
    %c0_0 = arith.constant 0 : index
    %c0_1 = arith.constant 0 : index
    %0 = vector.load %arg3[%c0, %c0_0, %c0_1] : memref<1x2x128xf32, #tpu.memory_space<vmem>>, vector<1x2x128xf32>
    %1 = vector.shape_cast %0 : vector<1x2x128xf32> to vector<2x128xf32>
    %c0_2 = arith.constant 0 : index
    %c0_3 = arith.constant 0 : index
    %c0_4 = arith.constant 0 : index
    %2 = vector.load %arg2[%c0_2, %c0_3, %c0_4] : memref<1x2x4xi32, #tpu.memory_space<vmem>>, vector<1x2x4xi32>
    %3 = vector.shape_cast %2 : vector<1x2x4xi32> to vector<2x4xi32>
    %4 = tpu.iota {dimensions = array<i32: 1>} : vector<2x64xi32>
    %5 = vector.extract_strided_slice %3 {offsets = [0, 0], sizes = [2, 1], strides = [1, 1]} : vector<2x4xi32> to vector<2x1xi32>
    %6 = vector.broadcast %5 : vector<2x1xi32> to vector<2x64xi32>
    %7 = arith.cmpi eq, %4, %6 : vector<2x64xi32>
    %8 = vector.extract_strided_slice %3 {offsets = [0, 1], sizes = [2, 1], strides = [1, 1]} : vector<2x4xi32> to vector<2x1xi32>
    %9 = vector.broadcast %8 : vector<2x1xi32> to vector<2x64xi32>
    %10 = arith.cmpi eq, %4, %9 : vector<2x64xi32>
    %11 = arith.ori %7, %10 : vector<2x64xi1>
    %12 = vector.extract_strided_slice %3 {offsets = [0, 2], sizes = [2, 1], strides = [1, 1]} : vector<2x4xi32> to vector<2x1xi32>
    %13 = vector.broadcast %12 : vector<2x1xi32> to vector<2x64xi32>
    %14 = arith.cmpi eq, %4, %13 : vector<2x64xi32>
    %15 = arith.ori %11, %14 : vector<2x64xi1>
    %16 = vector.extract_strided_slice %3 {offsets = [0, 3], sizes = [2, 1], strides = [1, 1]} : vector<2x4xi32> to vector<2x1xi32>
    %17 = vector.broadcast %16 : vector<2x1xi32> to vector<2x64xi32>
    %18 = arith.cmpi eq, %4, %17 : vector<2x64xi32>
    %19 = arith.ori %15, %18 : vector<2x64xi1>
    %20 = arith.extui %19 : vector<2x64xi1> to vector<2x64xi32>
    %21 = arith.sitofp %20 : vector<2x64xi32> to vector<2x64xf32>
    %c0_5 = arith.constant 0 : index
    %c0_6 = arith.constant 0 : index
    %22 = vector.load %arg4[%c0_5, %c0_6] : memref<64x256xf32, #tpu.memory_space<vmem>>, vector<64x256xf32>
    %cst = arith.constant dense<0.000000e+00> : vector<2x256xf32>
    %23 = tpu.matmul %21, %22, %cst {dimension_numbers = #tpu.dot_dimension_numbers<[1], [0], [0], [1], [0, 0, 1, 1], [], []>, precision = #tpu.contract_precision<fp32>} : vector<2x64xf32>, vector<64x256xf32>, vector<2x256xf32> -> vector<2x256xf32>
    %c0_7 = arith.constant 0 : index
    %c0_8 = arith.constant 0 : index
    %24 = vector.load %arg5[%c0_7, %c0_8] : memref<128x128xf32, #tpu.memory_space<vmem>>, vector<128x128xf32>
    %cst_9 = arith.constant dense<0.000000e+00> : vector<2x128xf32>
    %25 = tpu.matmul %1, %24, %cst_9 {dimension_numbers = #tpu.dot_dimension_numbers<[1], [0], [0], [1], [0, 0, 1, 1], [], []>, precision = #tpu.contract_precision<fp32>} : vector<2x128xf32>, vector<128x128xf32>, vector<2x128xf32> -> vector<2x128xf32>
    %26 = vector.extract_strided_slice %23 {offsets = [0, 0], sizes = [2, 128], strides = [1, 1]} : vector<2x256xf32> to vector<2x128xf32>
    %27 = arith.mulf %1, %26 : vector<2x128xf32>
    %28 = vector.extract_strided_slice %23 {offsets = [0, 128], sizes = [2, 128], strides = [1, 1]} : vector<2x256xf32> to vector<2x128xf32>
    %29 = arith.mulf %25, %28 : vector<2x128xf32>
    %30 = arith.addf %27, %29 : vector<2x128xf32>
    %c0_10 = arith.constant 0 : index
    %c0_11 = arith.constant 0 : index
    %c0_12 = arith.constant 0 : index
    %31 = vector.load %arg6[%c0_10, %c0_11, %c0_12] : memref<1x2x128xf32, #tpu.memory_space<vmem>>, vector<1x2x128xf32>
    %32 = vector.shape_cast %31 : vector<1x2x128xf32> to vector<2x128xf32>
    %33 = vector.shape_cast %30 : vector<2x128xf32> to vector<1x2x128xf32>
    tpu.vector_store %arg6[%c0_10, %c0_11, %c0_12], %33 {strides = array<i32>} : memref<1x2x128xf32, #tpu.memory_space<vmem>>, vector<1x2x128xf32>,
    return
  }
  func.func @transform_0(%arg0: i32, %arg1: i32) -> (i32, i32, i32) {
    %c0_i32 = arith.constant 0 : i32
    %c0_i32_0 = arith.constant 0 : i32
    return %arg1, %arg0, %c0_i32 : i32, i32, i32
  }
  func.func @transform_1(%arg0: i32, %arg1: i32) -> (i32, i32, i32) {
    %c0_i32 = arith.constant 0 : i32
    %c0_i32_0 = arith.constant 0 : i32
    return %arg1, %arg0, %c0_i32 : i32, i32, i32
  }
  func.func @transform_2(%arg0: i32, %arg1: i32) -> (i32, i32) {
    %c0_i32 = arith.constant 0 : i32
    %c0_i32_0 = arith.constant 0 : i32
    %c0_i32_1 = arith.constant 0 : i32
    return %c0_i32, %c0_i32_0 : i32, i32
  }
  func.func @transform_3(%arg0: i32, %arg1: i32) -> (i32, i32) {
    %c0_i32 = arith.constant 0 : i32
    %c0_i32_0 = arith.constant 0 : i32
    %c0_i32_1 = arith.constant 0 : i32
    return %c0_i32, %c0_i32_0 : i32, i32
  }
  func.func @transform_4(%arg0: i32, %arg1: i32) -> (i32, i32, i32) {
    %c0_i32 = arith.constant 0 : i32
    %c0_i32_0 = arith.constant 0 : i32
    return %arg1, %arg0, %c0_i32 : i32, i32, i32
  }
}

</mosaic_0001>

<llo_original>
// kernel: tpu_custom_call.1
$region0: #{tpu_custom_call.1}
  #allocation0 [shape = 'u32[]', space=smem, size = 0x4, offset = 0x4, fixed_abs, tag = 'smem constant byte address 0x4 - core index']
  #allocation1 [shape = 'u32[72,128]{1,0:T(1,128)}', space=vmem, size = 0x9000, scoped, tag = 'internal scratch']
  %s0 = inlined_call_operand.hbm [shape: s32[2,2,4], index: 0, kind: input, shape index: {}]
  %s1 = inlined_call_operand.hbm [shape: f32[2,2,128], index: 1, kind: input, shape index: {}]
  %s2 = inlined_call_operand.hbm [shape: f32[64,256], index: 2, kind: input, shape index: {}]
  %s3 = inlined_call_operand.hbm [shape: f32[128,128], index: 3, kind: input, shape index: {}]
  %s4 = inlined_call_operand.hbm [shape: f32[2,2,128], index: 4, kind: output, shape index: {}]
  %s5 = sld [smem:[#allocation0]]
  $region65: #{tpu_custom_call.1} parent=0
    _
  %s7 = ssub.s32 1, %s5
  %s8 = scalar_select 0, %s7, %s5
  $region1: #{tpu_custom_call.1} parent=0
    #allocation2 [shape = 'u8[2048]{0}', space=vmem, size = 0x800, scoped, tag = 'input window, operand 0']
    #allocation3 [shape = 's32[2]{0}', space=sflag, size = 0x8, scoped, tag = 'scoped memory for tpu_custom_call.1']
    #allocation4 [shape = 's32[2]{0}', space=sflag, size = 0x8, scoped, tag = 'scoped memory for tpu_custom_call.1']
    #allocation5 [shape = 'u8[2048]{0}', space=vmem, size = 0x800, scoped, tag = 'input window, operand 1']
    #allocation6 [shape = 's32[2]{0}', space=sflag, size = 0x8, scoped, tag = 'scoped memory for tpu_custom_call.1']
    #allocation7 [shape = 'u8[65536]{0}', space=vmem, size = 0x10000, scoped, tag = 'input window, operand 2, single buffered']
    #allocation8 [shape = 'u8[65536]{0}', space=vmem, size = 0x10000, scoped, tag = 'input window, operand 3, single buffered']
    #allocation9 [shape = 's32[1]{0}', space=sflag, size = 0x4, scoped, tag = 'scoped memory for tpu_custom_call.1']
    #allocation10 [shape = 'u8[2048]{0}', space=vmem, size = 0x800, scoped, tag = 'output window, operand 0']
    %9 = vsyncpa [#allocation3], 0
    %s10 = scalar_lea.sflag [#allocation3], 1
    %11 = vsyncpa %s10, 0
    %12 = vsyncpa [#allocation6], 0
    %s13 = scalar_lea.sflag [#allocation6], 1
    %14 = vsyncpa %s13, 0
    %15 = vsyncpa [#allocation9], 0
    %16 = vsyncpa [#allocation4], 0
    %s17 = scalar_lea.sflag [#allocation4], 1
    %18 = vsyncpa %s17, 0
    loop: start=0, step=1, limit=4
    $region2: #{tpu_custom_call.1} parent=1 // loop_pre_header
      _
    $region3: #{tpu_custom_call.1} parent=1 // loop_header
      %s20 = sphi 0, %s24
      %p21 = scmp.ge.s32.totalorder %s20, 4
      %s27 = sphi 0, %s39
      %s28 = sphi 0, %s35
      %s29 = sphi 0, %s27
      %s30 = sphi 0, %s28
      %s31 = sphi 0, %s29
      %s32 = sphi 0, %s30
      %s44 = sphi 0, %s46
      %s47 = sphi 0, %s44
      %s48 = sphi 0, %s47
      %s64 = sphi 0, %s48
      %s72 = sphi 0, %s74
      %s75 = sphi 0, %s72
      %s76 = sphi 0, %s75
      %s92 = sphi 0, %s76
      %s96 = sphi 0, %s96
      %s98 = sphi 0, %s96
      %s99 = sphi 0, %s98
      %s113 = sphi 0, %s99
      %s117 = sphi 0, %s117
      %s119 = sphi 0, %s117
      %s120 = sphi 0, %s119
      %s134 = sphi 0, %s120
      %s142 = sphi 0, %s144
      %s145 = sphi 0, %s142
      %s146 = sphi 0, %s145
      %s162 = sphi 0, %s146
    $region4: #{tpu_custom_call.1} parent=1 // loop_header_branch
      %23 = sbr.rel (%p21) target = $region8
    $region5: #{tpu_custom_call.1} parent=1 // loop_body
      %s25 = ssub.s32 %s20, 1
      %s26 = ssub.s32 %s20, 2
      %s33 = sadd.s32 1, %s28
      %p34 = scmp.ge.s32.totalorder %s33, 2
      %s35 = scalar_select %p34, 0, %s33
      %s36 = sadd.s32 1, %s27
      %s37 = scalar_select %p34, %s36, %s27
      %p38 = scmp.ge.s32.totalorder %s37, 1
      %s39 = scalar_select %p38, 0, %s37
      %s40 = ssub.s32 %s28, %s35
      %s41 = ssub.s32 %s27, %s39
      %s42 = sor.u32 %s40, %s41
      %p43 = scmp.eq.s32.totalorder %s42, 0
      %s45 = sadd.s32 %s44, 1
      %s46 = scalar_select %p43, %s44, %s45
      %p49 = pneg %p43
      %p50 = scmp.eq.s32.totalorder %s20, 1
      %p51 = por %p49, %p50
      %p52 = scmp.ne.s32.totalorder %s44, %s47
      %p53 = scmp.eq.s32.totalorder %s20, 0
      %p54 = por %p52, %p53
      %p55 = scmp.ne.s32.totalorder %s44, %s47
      %p56 = scmp.eq.s32.totalorder %s25, 1
      %p57 = por %p55, %p56
      %p58 = scmp.ne.s32.totalorder %s47, %s48
      %p59 = scmp.eq.s32.totalorder %s25, 0
      %p60 = por %p58, %p59
      %p61 = scmp.ne.s32.totalorder %s47, %s48
      %p62 = scmp.eq.s32.totalorder %s26, 1
      %p63 = por %p61, %p62
      %p65 = scmp.ne.s32.totalorder %s48, %s64
      %p66 = scmp.eq.s32.totalorder %s26, 0
      %p67 = por %p65, %p66
      %s68 = ssub.s32 %s28, %s35
      %s69 = ssub.s32 %s27, %s39
      %s70 = sor.u32 %s68, %s69
      %p71 = scmp.eq.s32.totalorder %s70, 0
      %s73 = sadd.s32 %s72, 1
      %s74 = scalar_select %p71, %s72, %s73
      %p77 = pneg %p71
      %p78 = scmp.eq.s32.totalorder %s20, 1
      %p79 = por %p77, %p78
      %p80 = scmp.ne.s32.totalorder %s72, %s75
      %p81 = scmp.eq.s32.totalorder %s20, 0
      %p82 = por %p80, %p81
      %p83 = scmp.ne.s32.totalorder %s72, %s75
      %p84 = scmp.eq.s32.totalorder %s25, 1
      %p85 = por %p83, %p84
      %p86 = scmp.ne.s32.totalorder %s75, %s76
      %p87 = scmp.eq.s32.totalorder %s25, 0
      %p88 = por %p86, %p87
      %p89 = scmp.ne.s32.totalorder %s75, %s76
      %p90 = scmp.eq.s32.totalorder %s26, 1
      %p91 = por %p89, %p90
      %p93 = scmp.ne.s32.totalorder %s76, %s92
      %p94 = scmp.eq.s32.totalorder %s26, 0
      %p95 = por %p93, %p94
      %s97 = sadd.s32 %s96, 1
      %p100 = scmp.eq.s32.totalorder %s20, 1
      %p101 = scmp.ne.s32.totalorder %s96, %s98
      %p102 = scmp.eq.s32.totalorder %s20, 0
      %p103 = por %p101, %p102
      %p104 = scmp.ne.s32.totalorder %s96, %s98
      %p105 = scmp.eq.s32.totalorder %s25, 1
      %p106 = por %p104, %p105
      %p107 = scmp.ne.s32.totalorder %s98, %s99
      %p108 = scmp.eq.s32.totalorder %s25, 0
      %p109 = por %p107, %p108
      %p110 = scmp.ne.s32.totalorder %s98, %s99
      %p111 = scmp.eq.s32.totalorder %s26, 1
      %p112 = por %p110, %p111
      %p114 = scmp.ne.s32.totalorder %s99, %s113
      %p115 = scmp.eq.s32.totalorder %s26, 0
      %p116 = por %p114, %p115
      %s118 = sadd.s32 %s117, 1
      %p121 = scmp.eq.s32.totalorder %s20, 1
      %p122 = scmp.ne.s32.totalorder %s117, %s119
      %p123 = scmp.eq.s32.totalorder %s20, 0
      %p124 = por %p122, %p123
      %p125 = scmp.ne.s32.totalorder %s117, %s119
      %p126 = scmp.eq.s32.totalorder %s25, 1
      %p127 = por %p125, %p126
      %p128 = scmp.ne.s32.totalorder %s119, %s120
      %p129 = scmp.eq.s32.totalorder %s25, 0
      %p130 = por %p128, %p129
      %p131 = scmp.ne.s32.totalorder %s119, %s120
      %p132 = scmp.eq.s32.totalorder %s26, 1
      %p133 = por %p131, %p132
      %p135 = scmp.ne.s32.totalorder %s120, %s134
      %p136 = scmp.eq.s32.totalorder %s26, 0
      %p137 = por %p135, %p136
      %s138 = ssub.s32 %s28, %s35
      %s139 = ssub.s32 %s27, %s39
      %s140 = sor.u32 %s138, %s139
      %p141 = scmp.eq.s32.totalorder %s140, 0
      %s143 = sadd.s32 %s142, 1
      %s144 = scalar_select %p141, %s142, %s143
      %p147 = pneg %p141
      %p148 = scmp.eq.s32.totalorder %s20, 1
      %p149 = por %p147, %p148
      %p150 = scmp.ne.s32.totalorder %s142, %s145
      %p151 = scmp.eq.s32.totalorder %s20, 0
      %p152 = por %p150, %p151
      %p153 = scmp.ne.s32.totalorder %s142, %s145
      %p154 = scmp.eq.s32.totalorder %s25, 1
      %p155 = por %p153, %p154
      %p156 = scmp.ne.s32.totalorder %s145, %s146
      %p157 = scmp.eq.s32.totalorder %s25, 0
      %p158 = por %p156, %p157
      %p159 = scmp.ne.s32.totalorder %s145, %s146
      %p160 = scmp.eq.s32.totalorder %s26, 1
      %p161 = por %p159, %p160
      %p163 = scmp.ne.s32.totalorder %s146, %s162
      %p164 = scmp.eq.s32.totalorder %s26, 0
      %p165 = por %p163, %p164
      %p166 = scmp.le.s32.totalorder 1, %s20
      %p167 = scmp.lt.s32.totalorder %s20, 3
      %p168 = pnand %p166, %p167
      %p169 = pneg %p168
      // Predicated region
      $region9: #{tpu_custom_call.1} parent=5 // pred_check
        _
      $region10: #{tpu_custom_call.1} parent=5 // pred_check_branch
        %171 = sbr.rel (%p168) target = $region12
      $region11: #{tpu_custom_call.1} parent=5 // pred_region
        %s172 = ssub.s32 %s20, 1
        // Predicated region
        $region13: #{tpu_custom_call.1} parent=11 // pred_check
          %p173 = pneg %p109
        $region14: #{tpu_custom_call.1} parent=11 // pred_check_branch
          %175 = sbr.rel (%p173) target = $region16
        $region15: #{tpu_custom_call.1} parent=11 // pred_region
          %177 = vsyncadd [#allocation6], 0
          %s178 = sshll.u32 %s2, 4
          %s179 = int_to_ptr.hbm [resolvable:$true] %s178
          %s180 = sshll.u32 [#allocation7], 4
          %s181 = int_to_ptr.vmem [resolvable:$true] %s180
          %186 = dma.hbm_to_vmem [thread:$0]  %s179, 2048, %s181, [#allocation6], 256, 256, 16
        $region16: #{tpu_custom_call.1} parent=11 // pred_fallthru
          _
        // Predicated region
        $region17: #{tpu_custom_call.1} parent=11 // pred_check
          %p187 = pneg %p130
        $region18: #{tpu_custom_call.1} parent=11 // pred_check_branch
          %189 = sbr.rel (%p187) target = $region20
        $region19: #{tpu_custom_call.1} parent=11 // pred_region
          %191 = vsyncadd [#allocation9], 0
          %s192 = sshll.u32 %s3, 4
          %s193 = int_to_ptr.hbm [resolvable:$true] %s192
          %s194 = sshll.u32 [#allocation8], 4
          %s195 = int_to_ptr.vmem [resolvable:$true] %s194
          %200 = dma.hbm_to_vmem [thread:$0]  %s193, 2048, %s195, [#allocation9], 128, 128, 8
        $region20: #{tpu_custom_call.1} parent=11 // pred_fallthru
          _
      $region12: #{tpu_custom_call.1} parent=5 // pred_fallthru
        _
      %p201 = scmp.lt.s32.totalorder %s20, 2
      // Predicated region
      $region21: #{tpu_custom_call.1} parent=5 // pred_check
        %p202 = pneg %p201
      $region22: #{tpu_custom_call.1} parent=5 // pred_check_branch
        %204 = sbr.rel (%p202) target = $region24
      $region23: #{tpu_custom_call.1} parent=5 // pred_region
        // Predicated region
        $region25: #{tpu_custom_call.1} parent=23 // pred_check
          %p205 = pneg %p54
        $region26: #{tpu_custom_call.1} parent=23 // pred_check_branch
          %207 = sbr.rel (%p205) target = $region28
        $region27: #{tpu_custom_call.1} parent=23 // pred_region
          %s208 = sand.u32 %s44, 1
          %s209 = scalar_lea.sflag [#allocation3], %s208
          %s210 = sand.u32 %s44, 1
          %s211 = smul.addr %s210, 2
          %s212 = scalar_lea.vmem [#allocation2], %s211
          %214 = vsyncadd %s209, 0
          %s215 = sadd.s32 %s27, %s28
          %s216 = smul.addr %s215, 2
          %s217 = scalar_lea.hbm %s0, %s216
          %s219 = sshll.u32 %s217, 4
          %s220 = int_to_ptr.hbm [resolvable:$true] %s219
          %s221 = sshll.u32 %s212, 4
          %s222 = int_to_ptr.vmem [resolvable:$true] %s221
          %224 = dma.hbm_to_vmem [thread:$0]  %s220, 32, %s222, %s209
        $region28: #{tpu_custom_call.1} parent=23 // pred_fallthru
          _
        // Predicated region
        $region29: #{tpu_custom_call.1} parent=23 // pred_check
          %p225 = pneg %p82
        $region30: #{tpu_custom_call.1} parent=23 // pred_check_branch
          %227 = sbr.rel (%p225) target = $region32
        $region31: #{tpu_custom_call.1} parent=23 // pred_region
          %s228 = sand.u32 %s20, 1
          %s229 = scalar_lea.sflag [#allocation6], %s228
          %s230 = sand.u32 %s72, 1
          %s231 = smul.addr %s230, 2
          %s232 = scalar_lea.vmem [#allocation5], %s231
          %234 = vsyncadd %s229, 0
          %s235 = sadd.s32 %s27, %s28
          %s236 = smul.addr %s235, 2
          %s237 = scalar_lea.hbm %s1, %s236
          %s239 = sshll.u32 %s237, 4
          %s240 = int_to_ptr.hbm [resolvable:$true] %s239
          %s241 = sshll.u32 %s232, 4
          %s242 = int_to_ptr.vmem [resolvable:$true] %s241
          %244 = dma.hbm_to_vmem [thread:$0]  %s240, 32, %s242, %s229
        $region32: #{tpu_custom_call.1} parent=23 // pred_fallthru
          _
      $region24: #{tpu_custom_call.1} parent=5 // pred_fallthru
        _
      %p245 = scmp.le.s32.totalorder 1, %s20
      %p246 = scmp.lt.s32.totalorder %s20, 3
      %p247 = pnand %p245, %p246
      %p248 = pneg %p247
      // Predicated region
      $region33: #{tpu_custom_call.1} parent=5 // pred_check
        _
      $region34: #{tpu_custom_call.1} parent=5 // pred_check_branch
        %250 = sbr.rel (%p247) target = $region36
      $region35: #{tpu_custom_call.1} parent=5 // pred_region
        %s251 = ssub.s32 %s20, 1
        %s252 = sand.u32 %s47, 1
        %s253 = scalar_lea.sflag [#allocation3], %s252
        %s254 = sand.u32 %s47, 1
        %s255 = smul.addr %s254, 2
        %s256 = scalar_lea.vmem [#allocation2], %s255
        // Predicated region
        $region37: #{tpu_custom_call.1} parent=35 // pred_check
          %p257 = pneg %p60
        $region38: #{tpu_custom_call.1} parent=35 // pred_check_branch
          %259 = sbr.rel (%p257) target = $region40
        $region39: #{tpu_custom_call.1} parent=35 // pred_region
          %261 = dma.done %s253, 32
        $region40: #{tpu_custom_call.1} parent=35 // pred_fallthru
          _
        %s262 = sand.u32 %s25, 1
        %s263 = scalar_lea.sflag [#allocation6], %s262
        %s264 = sand.u32 %s75, 1
        %s265 = smul.addr %s264, 2
        %s266 = scalar_lea.vmem [#allocation5], %s265
        // Predicated region
        $region41: #{tpu_custom_call.1} parent=35 // pred_check
          %p267 = pneg %p88
        $region42: #{tpu_custom_call.1} parent=35 // pred_check_branch
          %269 = sbr.rel (%p267) target = $region44
        $region43: #{tpu_custom_call.1} parent=35 // pred_region
          %271 = dma.done %s263, 32
        $region44: #{tpu_custom_call.1} parent=35 // pred_fallthru
          _
        // Predicated region
        $region45: #{tpu_custom_call.1} parent=35 // pred_check
          %p272 = pneg %p109
        $region46: #{tpu_custom_call.1} parent=35 // pred_check_branch
          %274 = sbr.rel (%p272) target = $region48
        $region47: #{tpu_custom_call.1} parent=35 // pred_region
          %276 = dma.done [#allocation6], 2048
        $region48: #{tpu_custom_call.1} parent=35 // pred_fallthru
          _
        // Predicated region
        $region49: #{tpu_custom_call.1} parent=35 // pred_check
          %p277 = pneg %p130
        $region50: #{tpu_custom_call.1} parent=35 // pred_check_branch
          %279 = sbr.rel (%p277) target = $region52
        $region51: #{tpu_custom_call.1} parent=35 // pred_region
          %281 = dma.done [#allocation9], 2048
        $region52: #{tpu_custom_call.1} parent=35 // pred_fallthru
          _
        %s282 = sand.u32 %s47, 1
        %s283 = scalar_lea.sflag [#allocation3], %s282
        %s284 = sand.u32 %s47, 1
        %s285 = smul.addr %s284, 2
        %s286 = scalar_lea.vmem [#allocation2], %s285
        %p287 = pneg %p60
        %p288 = pneg %p57
        %s289 = sand.u32 %s25, 1
        %s290 = scalar_lea.sflag [#allocation6], %s289
        %s291 = sand.u32 %s75, 1
        %s292 = smul.addr %s291, 2
        %s293 = scalar_lea.vmem [#allocation5], %s292
        %p294 = pneg %p88
        %p295 = pneg %p85
        %p296 = pneg %p109
        %p297 = pneg %p106
        %p298 = pneg %p130
        %p299 = pneg %p127
        %p300 = pneg %p158
        %p301 = pneg %p155
        %s302 = sand.u32 %s145, 1
        %s303 = scalar_lea.sflag [#allocation4], %s302
        %s304 = sand.u32 %s145, 1
        %s305 = smul.addr %s304, 2
        %s306 = scalar_lea.vmem [#allocation10], %s305
        %v307 = vld [vmem:[%s266] sm:$0x3]
        %v308 = vld [vmem:[%s256] sm:$0x3]
        %v309 = vlaneseq
        %v310 = vand.u32 %v309, 127
        %311 = vset.pattern.permute.xlu0 0
        %312 = vperm.xlu0 %311, %v308
        %v313 = vpop.permute.xlu0 %312
        %vm314 = vcmp.eq.s32.totalorder %v310, %v313
        %315 = vset.pattern.permute.xlu0 1
        %316 = vperm.xlu0 %315, %v308
        %v317 = vpop.permute.xlu0 %316
        %vm318 = vcmp.eq.s32.totalorder %v310, %v317
        %vm319 = vmor %vm314, %vm318
        %320 = vset.pattern.permute.xlu0 2
        %321 = vperm.xlu0 %320, %v308
        %v322 = vpop.permute.xlu0 %321
        %vm323 = vcmp.eq.s32.totalorder %v310, %v322
        %vm324 = vmor %vm319, %vm323
        %325 = vset.pattern.permute.xlu0 3
        %326 = vperm.xlu0 %325, %v308
        %v327 = vpop.permute.xlu0 %326
        %vm328 = vcmp.eq.s32.totalorder %v310, %v327
        %vm329 = vmor %vm324, %vm328
        %v330 = vsel %vm329, 1, 0
        %v331 = vcvt.s32.f32 %v330
        %v332 = vld [vmem:[#allocation7] sm:$0xff]
        %v333 = vld [vmem:[#allocation7 + $0x8] sm:$0xff]
        %v334 = vld [vmem:[#allocation7 + $0x10] sm:$0xff]
        %v335 = vld [vmem:[#allocation7 + $0x18] sm:$0xff]
        %v336 = vld [vmem:[#allocation7 + $0x20] sm:$0xff]
        %v337 = vld [vmem:[#allocation7 + $0x28] sm:$0xff]
        %v338 = vld [vmem:[#allocation7 + $0x30] sm:$0xff]
        %v339 = vld [vmem:[#allocation7 + $0x38] sm:$0xff]
        %v340 = vld [vmem:[#allocation7 + $0x40] sm:$0xff]
        %v341 = vld [vmem:[#allocation7 + $0x48] sm:$0xff]
        %v342 = vld [vmem:[#allocation7 + $0x50] sm:$0xff]
        %v343 = vld [vmem:[#allocation7 + $0x58] sm:$0xff]
        %v344 = vld [vmem:[#allocation7 + $0x60] sm:$0xff]
        %v345 = vld [vmem:[#allocation7 + $0x68] sm:$0xff]
        %v346 = vld [vmem:[#allocation7 + $0x70] sm:$0xff]
        %v347 = vld [vmem:[#allocation7 + $0x78] sm:$0xff]
        %vm348 = vcmask 523264
        %v350 = vsel %vm348, %v331, 0
        %352 = vmatpush.msra.mxu0 0.0
        %353 = vmatpush.msra.mxu0 0.0
        %354 = vmatpush.msra.mxu0 0.0
        %355 = vmatpush.msra.mxu0 0.0
        %356 = vmatpush.msra.mxu0 0.0
        %357 = vmatpush.msra.mxu0 0.0
        %358 = vmatpush.msra.mxu0 0.0
        %359 = vmatpush.msra.mxu0 0.0
        %v360 = vand.u32 %v346, 4294901760
        %361 = vmatpush.msra.mxu0 %v360
        %v362 = vand.u32 %v344, 4294901760
        %363 = vmatpush.msra.mxu0 %v362
        %v364 = vand.u32 %v342, 4294901760
        %365 = vmatpush.msra.mxu0 %v364
        %v366 = vand.u32 %v340, 4294901760
        %367 = vmatpush.msra.mxu0 %v366
        %v368 = vand.u32 %v338, 4294901760
        %369 = vmatpush.msra.mxu0 %v368
        %v370 = vand.u32 %v336, 4294901760
        %371 = vmatpush.msra.mxu0 %v370
        %v372 = vand.u32 %v334, 4294901760
        %373 = vmatpush.msra.mxu0 %v372
        %v374 = vand.u32 %v332, 4294901760
        %375 = vmatpush.msra.mxu0 %v374
        %v376 = vand.u32 %v350, 4294901760
        %v377 = vsub.f32 %v350, %v376
        %v378 = vand.u32 %v377, 4294901760
        %v379 = vsub.f32 %v377, %v378
        %v380 = vand.u32 %v379, 4294901760
        %381 = vmatmul.f32.gmra.mxu0 %v380
        %v382 = vpop.f32.mrf.mxu0
        %v383 = vadd.f32 0.0, %v382
        %384 = vdwg.mxu0
        %385 = vmatpush.msra.mxu0 0.0
        %386 = vmatpush.msra.mxu0 0.0
        %387 = vmatpush.msra.mxu0 0.0
        %388 = vmatpush.msra.mxu0 0.0
        %389 = vmatpush.msra.mxu0 0.0
        %390 = vmatpush.msra.mxu0 0.0
        %391 = vmatpush.msra.mxu0 0.0
        %392 = vmatpush.msra.mxu0 0.0
        %v393 = vand.u32 %v346, 4294901760
        %v394 = vsub.f32 %v346, %v393
        %v395 = vand.u32 %v394, 4294901760
        %v396 = vsub.f32 %v394, %v395
        %v397 = vand.u32 %v396, 4294901760
        %398 = vmatpush.msra.mxu0 %v397
        %v399 = vand.u32 %v344, 4294901760
        %v400 = vsub.f32 %v344, %v399
        %v401 = vand.u32 %v400, 4294901760
        %v402 = vsub.f32 %v400, %v401
        %v403 = vand.u32 %v402, 4294901760
        %404 = vmatpush.msra.mxu0 %v403
        %v405 = vand.u32 %v342, 4294901760
        %v406 = vsub.f32 %v342, %v405
        %v407 = vand.u32 %v406, 4294901760
        %v408 = vsub.f32 %v406, %v407
        %v409 = vand.u32 %v408, 4294901760
        %410 = vmatpush.msra.mxu0 %v409
        %v411 = vand.u32 %v340, 4294901760
        %v412 = vsub.f32 %v340, %v411
        %v413 = vand.u32 %v412, 4294901760
        %v414 = vsub.f32 %v412, %v413
        %v415 = vand.u32 %v414, 4294901760
        %416 = vmatpush.msra.mxu0 %v415
        %v417 = vand.u32 %v338, 4294901760
        %v418 = vsub.f32 %v338, %v417
        %v419 = vand.u32 %v418, 4294901760
        %v420 = vsub.f32 %v418, %v419
        %v421 = vand.u32 %v420, 4294901760
        %422 = vmatpush.msra.mxu0 %v421
        %v423 = vand.u32 %v336, 4294901760
        %v424 = vsub.f32 %v336, %v423
        %v425 = vand.u32 %v424, 4294901760
        %v426 = vsub.f32 %v424, %v425
        %v427 = vand.u32 %v426, 4294901760
        %428 = vmatpush.msra.mxu0 %v427
        %v429 = vand.u32 %v334, 4294901760
        %v430 = vsub.f32 %v334, %v429
        %v431 = vand.u32 %v430, 4294901760
        %v432 = vsub.f32 %v430, %v431
        %v433 = vand.u32 %v432, 4294901760
        %434 = vmatpush.msra.mxu0 %v433
        %v435 = vand.u32 %v332, 4294901760
        %v436 = vsub.f32 %v332, %v435
        %v437 = vand.u32 %v436, 4294901760
        %v438 = vsub.f32 %v436, %v437
        %v439 = vand.u32 %v438, 4294901760
        %440 = vmatpush.msra.mxu0 %v439
        %v441 = vand.u32 %v350, 4294901760
        %442 = vmatmul.f32.gmra.mxu0 %v441
        %v443 = vpop.f32.mrf.mxu0
        %v444 = vadd.f32 %v383, %v443
        %445 = vdwg.mxu0
        %446 = vmatpush.msra.mxu0 0.0
        %447 = vmatpush.msra.mxu0 0.0
        %448 = vmatpush.msra.mxu0 0.0
        %449 = vmatpush.msra.mxu0 0.0
        %450 = vmatpush.msra.mxu0 0.0
        %451 = vmatpush.msra.mxu0 0.0
        %452 = vmatpush.msra.mxu0 0.0
        %453 = vmatpush.msra.mxu0 0.0
        %v454 = vand.u32 %v346, 4294901760
        %v455 = vsub.f32 %v346, %v454
        %456 = vmatpush.msra.mxu0 %v455
        %v457 = vand.u32 %v344, 4294901760
        %v458 = vsub.f32 %v344, %v457
        %459 = vmatpush.msra.mxu0 %v458
        %v460 = vand.u32 %v342, 4294901760
        %v461 = vsub.f32 %v342, %v460
        %462 = vmatpush.msra.mxu0 %v461
        %v463 = vand.u32 %v340, 4294901760
        %v464 = vsub.f32 %v340, %v463
        %465 = vmatpush.msra.mxu0 %v464
        %v466 = vand.u32 %v338, 4294901760
        %v467 = vsub.f32 %v338, %v466
        %468 = vmatpush.msra.mxu0 %v467
        %v469 = vand.u32 %v336, 4294901760
        %v470 = vsub.f32 %v336, %v469
        %471 = vmatpush.msra.mxu0 %v470
        %v472 = vand.u32 %v334, 4294901760
        %v473 = vsub.f32 %v334, %v472
        %474 = vmatpush.msra.mxu0 %v473
        %v475 = vand.u32 %v332, 4294901760
        %v476 = vsub.f32 %v332, %v475
        %477 = vmatpush.msra.mxu0 %v476
        %v478 = vand.u32 %v350, 4294901760
        %v479 = vsub.f32 %v350, %v478
        %480 = vmatmul.f32.gmra.mxu0 %v479
        %v481 = vpop.f32.mrf.mxu0
        %v482 = vadd.f32 %v444, %v481
        %483 = vdwg.mxu0
        %484 = vmatpush.msra.mxu0 0.0
        %485 = vmatpush.msra.mxu0 0.0
        %486 = vmatpush.msra.mxu0 0.0
        %487 = vmatpush.msra.mxu0 0.0
        %488 = vmatpush.msra.mxu0 0.0
        %489 = vmatpush.msra.mxu0 0.0
        %490 = vmatpush.msra.mxu0 0.0
        %491 = vmatpush.msra.mxu0 0.0
        %v492 = vand.u32 %v346, 4294901760
        %493 = vmatpush.msra.mxu0 %v492
        %v494 = vand.u32 %v344, 4294901760
        %495 = vmatpush.msra.mxu0 %v494
        %v496 = vand.u32 %v342, 4294901760
        %497 = vmatpush.msra.mxu0 %v496
        %v498 = vand.u32 %v340, 4294901760
        %499 = vmatpush.msra.mxu0 %v498
        %v500 = vand.u32 %v338, 4294901760
        %501 = vmatpush.msra.mxu0 %v500
        %v502 = vand.u32 %v336, 4294901760
        %503 = vmatpush.msra.mxu0 %v502
        %v504 = vand.u32 %v334, 4294901760
        %505 = vmatpush.msra.mxu0 %v504
        %v506 = vand.u32 %v332, 4294901760
        %507 = vmatpush.msra.mxu0 %v506
        %v508 = vand.u32 %v350, 4294901760
        %v509 = vsub.f32 %v350, %v508
        %v510 = vand.u32 %v509, 4294901760
        %511 = vmatmul.f32.gmra.mxu0 %v510
        %v512 = vpop.f32.mrf.mxu0
        %v513 = vadd.f32 %v482, %v512
        %514 = vdwg.mxu0
        %515 = vmatpush.msra.mxu0 0.0
        %516 = vmatpush.msra.mxu0 0.0
        %517 = vmatpush.msra.mxu0 0.0
        %518 = vmatpush.msra.mxu0 0.0
        %519 = vmatpush.msra.mxu0 0.0
        %520 = vmatpush.msra.mxu0 0.0
        %521 = vmatpush.msra.mxu0 0.0
        %522 = vmatpush.msra.mxu0 0.0
        %v523 = vand.u32 %v346, 4294901760
        %v524 = vsub.f32 %v346, %v523
        %v525 = vand.u32 %v524, 4294901760
        %526 = vmatpush.msra.mxu0 %v525
        %v527 = vand.u32 %v344, 4294901760
        %v528 = vsub.f32 %v344, %v527
        %v529 = vand.u32 %v528, 4294901760
        %530 = vmatpush.msra.mxu0 %v529
        %v531 = vand.u32 %v342, 4294901760
        %v532 = vsub.f32 %v342, %v531
        %v533 = vand.u32 %v532, 4294901760
        %534 = vmatpush.msra.mxu0 %v533
        %v535 = vand.u32 %v340, 4294901760
        %v536 = vsub.f32 %v340, %v535
        %v537 = vand.u32 %v536, 4294901760
        %538 = vmatpush.msra.mxu0 %v537
        %v539 = vand.u32 %v338, 4294901760
        %v540 = vsub.f32 %v338, %v539
        %v541 = vand.u32 %v540, 4294901760
        %542 = vmatpush.msra.mxu0 %v541
        %v543 = vand.u32 %v336, 4294901760
        %v544 = vsub.f32 %v336, %v543
        %v545 = vand.u32 %v544, 4294901760
        %546 = vmatpush.msra.mxu0 %v545
        %v547 = vand.u32 %v334, 4294901760
        %v548 = vsub.f32 %v334, %v547
        %v549 = vand.u32 %v548, 4294901760
        %550 = vmatpush.msra.mxu0 %v549
        %v551 = vand.u32 %v332, 4294901760
        %v552 = vsub.f32 %v332, %v551
        %v553 = vand.u32 %v552, 4294901760
        %554 = vmatpush.msra.mxu0 %v553
        %v555 = vand.u32 %v350, 4294901760
        %556 = vmatmul.f32.gmra.mxu0 %v555
        %v557 = vpop.f32.mrf.mxu0
        %v558 = vadd.f32 %v513, %v557
        %559 = vdwg.mxu0
        %560 = vmatpush.msra.mxu0 0.0
        %561 = vmatpush.msra.mxu0 0.0
        %562 = vmatpush.msra.mxu0 0.0
        %563 = vmatpush.msra.mxu0 0.0
        %564 = vmatpush.msra.mxu0 0.0
        %565 = vmatpush.msra.mxu0 0.0
        %566 = vmatpush.msra.mxu0 0.0
        %567 = vmatpush.msra.mxu0 0.0
        %v568 = vand.u32 %v346, 4294901760
        %569 = vmatpush.msra.mxu0 %v568
        %v570 = vand.u32 %v344, 4294901760
        %571 = vmatpush.msra.mxu0 %v570
        %v572 = vand.u32 %v342, 4294901760
        %573 = vmatpush.msra.mxu0 %v572
        %v574 = vand.u32 %v340, 4294901760
        %575 = vmatpush.msra.mxu0 %v574
        %v576 = vand.u32 %v338, 4294901760
        %577 = vmatpush.msra.mxu0 %v576
        %v578 = vand.u32 %v336, 4294901760
        %579 = vmatpush.msra.mxu0 %v578
        %v580 = vand.u32 %v334, 4294901760
        %581 = vmatpush.msra.mxu0 %v580
        %v582 = vand.u32 %v332, 4294901760
        %583 = vmatpush.msra.mxu0 %v582
        %v584 = vand.u32 %v350, 4294901760
        %585 = vmatmul.f32.gmra.mxu0 %v584
        %v586 = vpop.f32.mrf.mxu0
        %v587 = vadd.f32 %v558, %v586
        %588 = vdwg.mxu0
        %589 = vmatpush.msra.mxu0 0.0
        %590 = vmatpush.msra.mxu0 0.0
        %591 = vmatpush.msra.mxu0 0.0
        %592 = vmatpush.msra.mxu0 0.0
        %593 = vmatpush.msra.mxu0 0.0
        %594 = vmatpush.msra.mxu0 0.0
        %595 = vmatpush.msra.mxu0 0.0
        %596 = vmatpush.msra.mxu0 0.0
        %v597 = vand.u32 %v347, 4294901760
        %598 = vmatpush.msra.mxu0 %v597
        %v599 = vand.u32 %v345, 4294901760
        %600 = vmatpush.msra.mxu0 %v599
        %v601 = vand.u32 %v343, 4294901760
        %602 = vmatpush.msra.mxu0 %v601
        %v603 = vand.u32 %v341, 4294901760
        %604 = vmatpush.msra.mxu0 %v603
        %v605 = vand.u32 %v339, 4294901760
        %606 = vmatpush.msra.mxu0 %v605
        %v607 = vand.u32 %v337, 4294901760
        %608 = vmatpush.msra.mxu0 %v607
        %v609 = vand.u32 %v335, 4294901760
        %610 = vmatpush.msra.mxu0 %v609
        %v611 = vand.u32 %v333, 4294901760
        %612 = vmatpush.msra.mxu0 %v611
        %v613 = vand.u32 %v350, 4294901760
        %v614 = vsub.f32 %v350, %v613
        %v615 = vand.u32 %v614, 4294901760
        %v616 = vsub.f32 %v614, %v615
        %v617 = vand.u32 %v616, 4294901760
        %618 = vmatmul.f32.gmra.mxu0 %v617
        %v619 = vpop.f32.mrf.mxu0
        %v620 = vadd.f32 0.0, %v619
        %621 = vdwg.mxu0
        %622 = vmatpush.msra.mxu0 0.0
        %623 = vmatpush.msra.mxu0 0.0
        %624 = vmatpush.msra.mxu0 0.0
        %625 = vmatpush.msra.mxu0 0.0
        %626 = vmatpush.msra.mxu0 0.0
        %627 = vmatpush.msra.mxu0 0.0
        %628 = vmatpush.msra.mxu0 0.0
        %629 = vmatpush.msra.mxu0 0.0
        %v630 = vand.u32 %v347, 4294901760
        %v631 = vsub.f32 %v347, %v630
        %v632 = vand.u32 %v631, 4294901760
        %v633 = vsub.f32 %v631, %v632
        %v634 = vand.u32 %v633, 4294901760
        %635 = vmatpush.msra.mxu0 %v634
        %v636 = vand.u32 %v345, 4294901760
        %v637 = vsub.f32 %v345, %v636
        %v638 = vand.u32 %v637, 4294901760
        %v639 = vsub.f32 %v637, %v638
        %v640 = vand.u32 %v639, 4294901760
        %641 = vmatpush.msra.mxu0 %v640
        %v642 = vand.u32 %v343, 4294901760
        %v643 = vsub.f32 %v343, %v642
        %v644 = vand.u32 %v643, 4294901760
        %v645 = vsub.f32 %v643, %v644
        %v646 = vand.u32 %v645, 4294901760
        %647 = vmatpush.msra.mxu0 %v646
        %v648 = vand.u32 %v341, 4294901760
        %v649 = vsub.f32 %v341, %v648
        %v650 = vand.u32 %v649, 4294901760
        %v651 = vsub.f32 %v649, %v650
        %v652 = vand.u32 %v651, 4294901760
        %653 = vmatpush.msra.mxu0 %v652
        %v654 = vand.u32 %v339, 4294901760
        %v655 = vsub.f32 %v339, %v654
        %v656 = vand.u32 %v655, 4294901760
        %v657 = vsub.f32 %v655, %v656
        %v658 = vand.u32 %v657, 4294901760
        %659 = vmatpush.msra.mxu0 %v658
        %v660 = vand.u32 %v337, 4294901760
        %v661 = vsub.f32 %v337, %v660
        %v662 = vand.u32 %v661, 4294901760
        %v663 = vsub.f32 %v661, %v662
        %v664 = vand.u32 %v663, 4294901760
        %665 = vmatpush.msra.mxu0 %v664
        %v666 = vand.u32 %v335, 4294901760
        %v667 = vsub.f32 %v335, %v666
        %v668 = vand.u32 %v667, 4294901760
        %v669 = vsub.f32 %v667, %v668
        %v670 = vand.u32 %v669, 4294901760
        %671 = vmatpush.msra.mxu0 %v670
        %v672 = vand.u32 %v333, 4294901760
        %v673 = vsub.f32 %v333, %v672
        %v674 = vand.u32 %v673, 4294901760
        %v675 = vsub.f32 %v673, %v674
        %v676 = vand.u32 %v675, 4294901760
        %677 = vmatpush.msra.mxu0 %v676
        %v678 = vand.u32 %v350, 4294901760
        %679 = vmatmul.f32.gmra.mxu0 %v678
        %v680 = vpop.f32.mrf.mxu0
        %v681 = vadd.f32 %v620, %v680
        %682 = vdwg.mxu0
        %683 = vmatpush.msra.mxu0 0.0
        %684 = vmatpush.msra.mxu0 0.0
        %685 = vmatpush.msra.mxu0 0.0
        %686 = vmatpush.msra.mxu0 0.0
        %687 = vmatpush.msra.mxu0 0.0
        %688 = vmatpush.msra.mxu0 0.0
        %689 = vmatpush.msra.mxu0 0.0
        %690 = vmatpush.msra.mxu0 0.0
        %v691 = vand.u32 %v347, 4294901760
        %v692 = vsub.f32 %v347, %v691
        %693 = vmatpush.msra.mxu0 %v692
        %v694 = vand.u32 %v345, 4294901760
        %v695 = vsub.f32 %v345, %v694
        %696 = vmatpush.msra.mxu0 %v695
        %v697 = vand.u32 %v343, 4294901760
        %v698 = vsub.f32 %v343, %v697
        %699 = vmatpush.msra.mxu0 %v698
        %v700 = vand.u32 %v341, 4294901760
        %v701 = vsub.f32 %v341, %v700
        %702 = vmatpush.msra.mxu0 %v701
        %v703 = vand.u32 %v339, 4294901760
        %v704 = vsub.f32 %v339, %v703
        %705 = vmatpush.msra.mxu0 %v704
        %v706 = vand.u32 %v337, 4294901760
        %v707 = vsub.f32 %v337, %v706
        %708 = vmatpush.msra.mxu0 %v707
        %v709 = vand.u32 %v335, 4294901760
        %v710 = vsub.f32 %v335, %v709
        %711 = vmatpush.msra.mxu0 %v710
        %v712 = vand.u32 %v333, 4294901760
        %v713 = vsub.f32 %v333, %v712
        %714 = vmatpush.msra.mxu0 %v713
        %v715 = vand.u32 %v350, 4294901760
        %v716 = vsub.f32 %v350, %v715
        %717 = vmatmul.f32.gmra.mxu0 %v716
        %v718 = vpop.f32.mrf.mxu0
        %v719 = vadd.f32 %v681, %v718
        %720 = vdwg.mxu0
        %721 = vmatpush.msra.mxu0 0.0
        %722 = vmatpush.msra.mxu0 0.0
        %723 = vmatpush.msra.mxu0 0.0
        %724 = vmatpush.msra.mxu0 0.0
        %725 = vmatpush.msra.mxu0 0.0
        %726 = vmatpush.msra.mxu0 0.0
        %727 = vmatpush.msra.mxu0 0.0
        %728 = vmatpush.msra.mxu0 0.0
        %v729 = vand.u32 %v347, 4294901760
        %730 = vmatpush.msra.mxu0 %v729
        %v731 = vand.u32 %v345, 4294901760
        %732 = vmatpush.msra.mxu0 %v731
        %v733 = vand.u32 %v343, 4294901760
        %734 = vmatpush.msra.mxu0 %v733
        %v735 = vand.u32 %v341, 4294901760
        %736 = vmatpush.msra.mxu0 %v735
        %v737 = vand.u32 %v339, 4294901760
        %738 = vmatpush.msra.mxu0 %v737
        %v739 = vand.u32 %v337, 4294901760
        %740 = vmatpush.msra.mxu0 %v739
        %v741 = vand.u32 %v335, 4294901760
        %742 = vmatpush.msra.mxu0 %v741
        %v743 = vand.u32 %v333, 4294901760
        %744 = vmatpush.msra.mxu0 %v743
        %v745 = vand.u32 %v350, 4294901760
        %v746 = vsub.f32 %v350, %v745
        %v747 = vand.u32 %v746, 4294901760
        %748 = vmatmul.f32.gmra.mxu0 %v747
        %v749 = vpop.f32.mrf.mxu0
        %v750 = vadd.f32 %v719, %v749
        %751 = vdwg.mxu0
        %752 = vmatpush.msra.mxu0 0.0
        %753 = vmatpush.msra.mxu0 0.0
        %754 = vmatpush.msra.mxu0 0.0
        %755 = vmatpush.msra.mxu0 0.0
        %756 = vmatpush.msra.mxu0 0.0
        %757 = vmatpush.msra.mxu0 0.0
        %758 = vmatpush.msra.mxu0 0.0
        %759 = vmatpush.msra.mxu0 0.0
        %v760 = vand.u32 %v347, 4294901760
        %v761 = vsub.f32 %v347, %v760
        %v762 = vand.u32 %v761, 4294901760
        %763 = vmatpush.msra.mxu0 %v762
        %v764 = vand.u32 %v345, 4294901760
        %v765 = vsub.f32 %v345, %v764
        %v766 = vand.u32 %v765, 4294901760
        %767 = vmatpush.msra.mxu0 %v766
        %v768 = vand.u32 %v343, 4294901760
        %v769 = vsub.f32 %v343, %v768
        %v770 = vand.u32 %v769, 4294901760
        %771 = vmatpush.msra.mxu0 %v770
        %v772 = vand.u32 %v341, 4294901760
        %v773 = vsub.f32 %v341, %v772
        %v774 = vand.u32 %v773, 4294901760
        %775 = vmatpush.msra.mxu0 %v774
        %v776 = vand.u32 %v339, 4294901760
        %v777 = vsub.f32 %v339, %v776
        %v778 = vand.u32 %v777, 4294901760
        %779 = vmatpush.msra.mxu0 %v778
        %v780 = vand.u32 %v337, 4294901760
        %v781 = vsub.f32 %v337, %v780
        %v782 = vand.u32 %v781, 4294901760
        %783 = vmatpush.msra.mxu0 %v782
        %v784 = vand.u32 %v335, 4294901760
        %v785 = vsub.f32 %v335, %v784
        %v786 = vand.u32 %v785, 4294901760
        %787 = vmatpush.msra.mxu0 %v786
        %v788 = vand.u32 %v333, 4294901760
        %v789 = vsub.f32 %v333, %v788
        %v790 = vand.u32 %v789, 4294901760
        %791 = vmatpush.msra.mxu0 %v790
        %v792 = vand.u32 %v350, 4294901760
        %793 = vmatmul.f32.gmra.mxu0 %v792
        %v794 = vpop.f32.mrf.mxu0
        %v795 = vadd.f32 %v750, %v794
        %796 = vdwg.mxu0
        %797 = vmatpush.msra.mxu0 0.0
        %798 = vmatpush.msra.mxu0 0.0
        %799 = vmatpush.msra.mxu0 0.0
        %800 = vmatpush.msra.mxu0 0.0
        %801 = vmatpush.msra.mxu0 0.0
        %802 = vmatpush.msra.mxu0 0.0
        %803 = vmatpush.msra.mxu0 0.0
        %804 = vmatpush.msra.mxu0 0.0
        %v805 = vand.u32 %v347, 4294901760
        %806 = vmatpush.msra.mxu0 %v805
        %v807 = vand.u32 %v345, 4294901760
        %808 = vmatpush.msra.mxu0 %v807
        %v809 = vand.u32 %v343, 4294901760
        %810 = vmatpush.msra.mxu0 %v809
        %v811 = vand.u32 %v341, 4294901760
        %812 = vmatpush.msra.mxu0 %v811
        %v813 = vand.u32 %v339, 4294901760
        %814 = vmatpush.msra.mxu0 %v813
        %v815 = vand.u32 %v337, 4294901760
        %816 = vmatpush.msra.mxu0 %v815
        %v817 = vand.u32 %v335, 4294901760
        %818 = vmatpush.msra.mxu0 %v817
        %v819 = vand.u32 %v333, 4294901760
        %820 = vmatpush.msra.mxu0 %v819
        %v821 = vand.u32 %v350, 4294901760
        %822 = vmatmul.f32.gmra.mxu0 %v821
        %v823 = vpop.f32.mrf.mxu0
        %v824 = vadd.f32 %v795, %v823
        %825 = vdwg.mxu0
        %v826 = vld [vmem:[#allocation8] sm:$0xff]
        %v827 = vld [vmem:[#allocation8 + $0x8] sm:$0xff]
        %v828 = vld [vmem:[#allocation8 + $0x10] sm:$0xff]
        %v829 = vld [vmem:[#allocation8 + $0x18] sm:$0xff]
        %v830 = vld [vmem:[#allocation8 + $0x20] sm:$0xff]
        %v831 = vld [vmem:[#allocation8 + $0x28] sm:$0xff]
        %v832 = vld [vmem:[#allocation8 + $0x30] sm:$0xff]
        %v833 = vld [vmem:[#allocation8 + $0x38] sm:$0xff]
        %v834 = vld [vmem:[#allocation8 + $0x40] sm:$0xff]
        %v835 = vld [vmem:[#allocation8 + $0x48] sm:$0xff]
        %v836 = vld [vmem:[#allocation8 + $0x50] sm:$0xff]
        %v837 = vld [vmem:[#allocation8 + $0x58] sm:$0xff]
        %v838 = vld [vmem:[#allocation8 + $0x60] sm:$0xff]
        %v839 = vld [vmem:[#allocation8 + $0x68] sm:$0xff]
        %v840 = vld [vmem:[#allocation8 + $0x70] sm:$0xff]
        %v841 = vld [vmem:[#allocation8 + $0x78] sm:$0xff]
        %v842 = vand.u32 %v841, 4294901760
        %843 = vmatpush.msra.mxu0 %v842
        %v844 = vand.u32 %v840, 4294901760
        %845 = vmatpush.msra.mxu0 %v844
        %v846 = vand.u32 %v839, 4294901760
        %847 = vmatpush.msra.mxu0 %v846
        %v848 = vand.u32 %v838, 4294901760
        %849 = vmatpush.msra.mxu0 %v848
        %v850 = vand.u32 %v837, 4294901760
        %851 = vmatpush.msra.mxu0 %v850
        %v852 = vand.u32 %v836, 4294901760
        %853 = vmatpush.msra.mxu0 %v852
        %v854 = vand.u32 %v835, 4294901760
        %855 = vmatpush.msra.mxu0 %v854
        %v856 = vand.u32 %v834, 4294901760
        %857 = vmatpush.msra.mxu0 %v856
        %v858 = vand.u32 %v833, 4294901760
        %859 = vmatpush.msra.mxu0 %v858
        %v860 = vand.u32 %v832, 4294901760
        %861 = vmatpush.msra.mxu0 %v860
        %v862 = vand.u32 %v831, 4294901760
        %863 = vmatpush.msra.mxu0 %v862
        %v864 = vand.u32 %v830, 4294901760
        %865 = vmatpush.msra.mxu0 %v864
        %v866 = vand.u32 %v829, 4294901760
        %867 = vmatpush.msra.mxu0 %v866
        %v868 = vand.u32 %v828, 4294901760
        %869 = vmatpush.msra.mxu0 %v868
        %v870 = vand.u32 %v827, 4294901760
        %871 = vmatpush.msra.mxu0 %v870
        %v872 = vand.u32 %v826, 4294901760
        %873 = vmatpush.msra.mxu0 %v872
        %v874 = vand.u32 %v307, 4294901760
        %v875 = vsub.f32 %v307, %v874
        %v876 = vand.u32 %v875, 4294901760
        %v877 = vsub.f32 %v875, %v876
        %v878 = vand.u32 %v877, 4294901760
        %879 = vmatmul.f32.gmra.mxu0 %v878
        %v880 = vpop.f32.mrf.mxu0
        %v881 = vadd.f32 0.0, %v880
        %882 = vdwg.mxu0
        %v883 = vand.u32 %v841, 4294901760
        %v884 = vsub.f32 %v841, %v883
        %v885 = vand.u32 %v884, 4294901760
        %v886 = vsub.f32 %v884, %v885
        %v887 = vand.u32 %v886, 4294901760
        %888 = vmatpush.msra.mxu0 %v887
        %v889 = vand.u32 %v840, 4294901760
        %v890 = vsub.f32 %v840, %v889
        %v891 = vand.u32 %v890, 4294901760
        %v892 = vsub.f32 %v890, %v891
        %v893 = vand.u32 %v892, 4294901760
        %894 = vmatpush.msra.mxu0 %v893
        %v895 = vand.u32 %v839, 4294901760
        %v896 = vsub.f32 %v839, %v895
        %v897 = vand.u32 %v896, 4294901760
        %v898 = vsub.f32 %v896, %v897
        %v899 = vand.u32 %v898, 4294901760
        %900 = vmatpush.msra.mxu0 %v899
        %v901 = vand.u32 %v838, 4294901760
        %v902 = vsub.f32 %v838, %v901
        %v903 = vand.u32 %v902, 4294901760
        %v904 = vsub.f32 %v902, %v903
        %v905 = vand.u32 %v904, 4294901760
        %906 = vmatpush.msra.mxu0 %v905
        %v907 = vand.u32 %v837, 4294901760
        %v908 = vsub.f32 %v837, %v907
        %v909 = vand.u32 %v908, 4294901760
        %v910 = vsub.f32 %v908, %v909
        %v911 = vand.u32 %v910, 4294901760
        %912 = vmatpush.msra.mxu0 %v911
        %v913 = vand.u32 %v836, 4294901760
        %v914 = vsub.f32 %v836, %v913
        %v915 = vand.u32 %v914, 4294901760
        %v916 = vsub.f32 %v914, %v915
        %v917 = vand.u32 %v916, 4294901760
        %918 = vmatpush.msra.mxu0 %v917
        %v919 = vand.u32 %v835, 4294901760
        %v920 = vsub.f32 %v835, %v919
        %v921 = vand.u32 %v920, 4294901760
        %v922 = vsub.f32 %v920, %v921
        %v923 = vand.u32 %v922, 4294901760
        %924 = vmatpush.msra.mxu0 %v923
        %v925 = vand.u32 %v834, 4294901760
        %v926 = vsub.f32 %v834, %v925
        %v927 = vand.u32 %v926, 4294901760
        %v928 = vsub.f32 %v926, %v927
        %v929 = vand.u32 %v928, 4294901760
        %930 = vmatpush.msra.mxu0 %v929
        %v931 = vand.u32 %v833, 4294901760
        %v932 = vsub.f32 %v833, %v931
        %v933 = vand.u32 %v932, 4294901760
        %v934 = vsub.f32 %v932, %v933
        %v935 = vand.u32 %v934, 4294901760
        %936 = vmatpush.msra.mxu0 %v935
        %v937 = vand.u32 %v832, 4294901760
        %v938 = vsub.f32 %v832, %v937
        %v939 = vand.u32 %v938, 4294901760
        %v940 = vsub.f32 %v938, %v939
        %v941 = vand.u32 %v940, 4294901760
        %942 = vmatpush.msra.mxu0 %v941
        %v943 = vand.u32 %v831, 4294901760
        %v944 = vsub.f32 %v831, %v943
        %v945 = vand.u32 %v944, 4294901760
        %v946 = vsub.f32 %v944, %v945
        %v947 = vand.u32 %v946, 4294901760
        %948 = vmatpush.msra.mxu0 %v947
        %v949 = vand.u32 %v830, 4294901760
        %v950 = vsub.f32 %v830, %v949
        %v951 = vand.u32 %v950, 4294901760
        %v952 = vsub.f32 %v950, %v951
        %v953 = vand.u32 %v952, 4294901760
        %954 = vmatpush.msra.mxu0 %v953
        %v955 = vand.u32 %v829, 4294901760
        %v956 = vsub.f32 %v829, %v955
        %v957 = vand.u32 %v956, 4294901760
        %v958 = vsub.f32 %v956, %v957
        %v959 = vand.u32 %v958, 4294901760
        %960 = vmatpush.msra.mxu0 %v959
        %v961 = vand.u32 %v828, 4294901760
        %v962 = vsub.f32 %v828, %v961
        %v963 = vand.u32 %v962, 4294901760
        %v964 = vsub.f32 %v962, %v963
        %v965 = vand.u32 %v964, 4294901760
        %966 = vmatpush.msra.mxu0 %v965
        %v967 = vand.u32 %v827, 4294901760
        %v968 = vsub.f32 %v827, %v967
        %v969 = vand.u32 %v968, 4294901760
        %v970 = vsub.f32 %v968, %v969
        %v971 = vand.u32 %v970, 4294901760
        %972 = vmatpush.msra.mxu0 %v971
        %v973 = vand.u32 %v826, 4294901760
        %v974 = vsub.f32 %v826, %v973
        %v975 = vand.u32 %v974, 4294901760
        %v976 = vsub.f32 %v974, %v975
        %v977 = vand.u32 %v976, 4294901760
        %978 = vmatpush.msra.mxu0 %v977
        %v979 = vand.u32 %v307, 4294901760
        %980 = vmatmul.f32.gmra.mxu0 %v979
        %v981 = vpop.f32.mrf.mxu0
        %v982 = vadd.f32 %v881, %v981
        %983 = vdwg.mxu0
        %v984 = vand.u32 %v841, 4294901760
        %v985 = vsub.f32 %v841, %v984
        %986 = vmatpush.msra.mxu0 %v985
        %v987 = vand.u32 %v840, 4294901760
        %v988 = vsub.f32 %v840, %v987
        %989 = vmatpush.msra.mxu0 %v988
        %v990 = vand.u32 %v839, 4294901760
        %v991 = vsub.f32 %v839, %v990
        %992 = vmatpush.msra.mxu0 %v991
        %v993 = vand.u32 %v838, 4294901760
        %v994 = vsub.f32 %v838, %v993
        %995 = vmatpush.msra.mxu0 %v994
        %v996 = vand.u32 %v837, 4294901760
        %v997 = vsub.f32 %v837, %v996
        %998 = vmatpush.msra.mxu0 %v997
        %v999 = vand.u32 %v836, 4294901760
        %v1000 = vsub.f32 %v836, %v999
        %1001 = vmatpush.msra.mxu0 %v1000
        %v1002 = vand.u32 %v835, 4294901760
        %v1003 = vsub.f32 %v835, %v1002
        %1004 = vmatpush.msra.mxu0 %v1003
        %v1005 = vand.u32 %v834, 4294901760
        %v1006 = vsub.f32 %v834, %v1005
        %1007 = vmatpush.msra.mxu0 %v1006
        %v1008 = vand.u32 %v833, 4294901760
        %v1009 = vsub.f32 %v833, %v1008
        %1010 = vmatpush.msra.mxu0 %v1009
        %v1011 = vand.u32 %v832, 4294901760
        %v1012 = vsub.f32 %v832, %v1011
        %1013 = vmatpush.msra.mxu0 %v1012
        %v1014 = vand.u32 %v831, 4294901760
        %v1015 = vsub.f32 %v831, %v1014
        %1016 = vmatpush.msra.mxu0 %v1015
        %v1017 = vand.u32 %v830, 4294901760
        %v1018 = vsub.f32 %v830, %v1017
        %1019 = vmatpush.msra.mxu0 %v1018
        %v1020 = vand.u32 %v829, 4294901760
        %v1021 = vsub.f32 %v829, %v1020
        %1022 = vmatpush.msra.mxu0 %v1021
        %v1023 = vand.u32 %v828, 4294901760
        %v1024 = vsub.f32 %v828, %v1023
        %1025 = vmatpush.msra.mxu0 %v1024
        %v1026 = vand.u32 %v827, 4294901760
        %v1027 = vsub.f32 %v827, %v1026
        %1028 = vmatpush.msra.mxu0 %v1027
        %v1029 = vand.u32 %v826, 4294901760
        %v1030 = vsub.f32 %v826, %v1029
        %1031 = vmatpush.msra.mxu0 %v1030
        %v1032 = vand.u32 %v307, 4294901760
        %v1033 = vsub.f32 %v307, %v1032
        %1034 = vmatmul.f32.gmra.mxu0 %v1033
        %v1035 = vpop.f32.mrf.mxu0
        %v1036 = vadd.f32 %v982, %v1035
        %1037 = vdwg.mxu0
        %v1038 = vand.u32 %v841, 4294901760
        %1039 = vmatpush.msra.mxu0 %v1038
        %v1040 = vand.u32 %v840, 4294901760
        %1041 = vmatpush.msra.mxu0 %v1040
        %v1042 = vand.u32 %v839, 4294901760
        %1043 = vmatpush.msra.mxu0 %v1042
        %v1044 = vand.u32 %v838, 4294901760
        %1045 = vmatpush.msra.mxu0 %v1044
        %v1046 = vand.u32 %v837, 4294901760
        %1047 = vmatpush.msra.mxu0 %v1046
        %v1048 = vand.u32 %v836, 4294901760
        %1049 = vmatpush.msra.mxu0 %v1048
        %v1050 = vand.u32 %v835, 4294901760
        %1051 = vmatpush.msra.mxu0 %v1050
        %v1052 = vand.u32 %v834, 4294901760
        %1053 = vmatpush.msra.mxu0 %v1052
        %v1054 = vand.u32 %v833, 4294901760
        %1055 = vmatpush.msra.mxu0 %v1054
        %v1056 = vand.u32 %v832, 4294901760
        %1057 = vmatpush.msra.mxu0 %v1056
        %v1058 = vand.u32 %v831, 4294901760
        %1059 = vmatpush.msra.mxu0 %v1058
        %v1060 = vand.u32 %v830, 4294901760
        %1061 = vmatpush.msra.mxu0 %v1060
        %v1062 = vand.u32 %v829, 4294901760
        %1063 = vmatpush.msra.mxu0 %v1062
        %v1064 = vand.u32 %v828, 4294901760
        %1065 = vmatpush.msra.mxu0 %v1064
        %v1066 = vand.u32 %v827, 4294901760
        %1067 = vmatpush.msra.mxu0 %v1066
        %v1068 = vand.u32 %v826, 4294901760
        %1069 = vmatpush.msra.mxu0 %v1068
        %v1070 = vand.u32 %v307, 4294901760
        %v1071 = vsub.f32 %v307, %v1070
        %v1072 = vand.u32 %v1071, 4294901760
        %1073 = vmatmul.f32.gmra.mxu0 %v1072
        %v1074 = vpop.f32.mrf.mxu0
        %v1075 = vadd.f32 %v1036, %v1074
        %1076 = vdwg.mxu0
        %v1077 = vand.u32 %v841, 4294901760
        %v1078 = vsub.f32 %v841, %v1077
        %v1079 = vand.u32 %v1078, 4294901760
        %1080 = vmatpush.msra.mxu0 %v1079
        %v1081 = vand.u32 %v840, 4294901760
        %v1082 = vsub.f32 %v840, %v1081
        %v1083 = vand.u32 %v1082, 4294901760
        %1084 = vmatpush.msra.mxu0 %v1083
        %v1085 = vand.u32 %v839, 4294901760
        %v1086 = vsub.f32 %v839, %v1085
        %v1087 = vand.u32 %v1086, 4294901760
        %1088 = vmatpush.msra.mxu0 %v1087
        %v1089 = vand.u32 %v838, 4294901760
        %v1090 = vsub.f32 %v838, %v1089
        %v1091 = vand.u32 %v1090, 4294901760
        %1092 = vmatpush.msra.mxu0 %v1091
        %v1093 = vand.u32 %v837, 4294901760
        %v1094 = vsub.f32 %v837, %v1093
        %v1095 = vand.u32 %v1094, 4294901760
        %1096 = vmatpush.msra.mxu0 %v1095
        %v1097 = vand.u32 %v836, 4294901760
        %v1098 = vsub.f32 %v836, %v1097
        %v1099 = vand.u32 %v1098, 4294901760
        %1100 = vmatpush.msra.mxu0 %v1099
        %v1101 = vand.u32 %v835, 4294901760
        %v1102 = vsub.f32 %v835, %v1101
        %v1103 = vand.u32 %v1102, 4294901760
        %1104 = vmatpush.msra.mxu0 %v1103
        %v1105 = vand.u32 %v834, 4294901760
        %v1106 = vsub.f32 %v834, %v1105
        %v1107 = vand.u32 %v1106, 4294901760
        %1108 = vmatpush.msra.mxu0 %v1107
        %v1109 = vand.u32 %v833, 4294901760
        %v1110 = vsub.f32 %v833, %v1109
        %v1111 = vand.u32 %v1110, 4294901760
        %1112 = vmatpush.msra.mxu0 %v1111
        %v1113 = vand.u32 %v832, 4294901760
        %v1114 = vsub.f32 %v832, %v1113
        %v1115 = vand.u32 %v1114, 4294901760
        %1116 = vmatpush.msra.mxu0 %v1115
        %v1117 = vand.u32 %v831, 4294901760
        %v1118 = vsub.f32 %v831, %v1117
        %v1119 = vand.u32 %v1118, 4294901760
        %1120 = vmatpush.msra.mxu0 %v1119
        %v1121 = vand.u32 %v830, 4294901760
        %v1122 = vsub.f32 %v830, %v1121
        %v1123 = vand.u32 %v1122, 4294901760
        %1124 = vmatpush.msra.mxu0 %v1123
        %v1125 = vand.u32 %v829, 4294901760
        %v1126 = vsub.f32 %v829, %v1125
        %v1127 = vand.u32 %v1126, 4294901760
        %1128 = vmatpush.msra.mxu0 %v1127
        %v1129 = vand.u32 %v828, 4294901760
        %v1130 = vsub.f32 %v828, %v1129
        %v1131 = vand.u32 %v1130, 4294901760
        %1132 = vmatpush.msra.mxu0 %v1131
        %v1133 = vand.u32 %v827, 4294901760
        %v1134 = vsub.f32 %v827, %v1133
        %v1135 = vand.u32 %v1134, 4294901760
        %1136 = vmatpush.msra.mxu0 %v1135
        %v1137 = vand.u32 %v826, 4294901760
        %v1138 = vsub.f32 %v826, %v1137
        %v1139 = vand.u32 %v1138, 4294901760
        %1140 = vmatpush.msra.mxu0 %v1139
        %v1141 = vand.u32 %v307, 4294901760
        %1142 = vmatmul.f32.gmra.mxu0 %v1141
        %v1143 = vpop.f32.mrf.mxu0
        %v1144 = vadd.f32 %v1075, %v1143
        %1145 = vdwg.mxu0
        %v1146 = vand.u32 %v841, 4294901760
        %1147 = vmatpush.msra.mxu0 %v1146
        %v1148 = vand.u32 %v840, 4294901760
        %1149 = vmatpush.msra.mxu0 %v1148
        %v1150 = vand.u32 %v839, 4294901760
        %1151 = vmatpush.msra.mxu0 %v1150
        %v1152 = vand.u32 %v838, 4294901760
        %1153 = vmatpush.msra.mxu0 %v1152
        %v1154 = vand.u32 %v837, 4294901760
        %1155 = vmatpush.msra.mxu0 %v1154
        %v1156 = vand.u32 %v836, 4294901760
        %1157 = vmatpush.msra.mxu0 %v1156
        %v1158 = vand.u32 %v835, 4294901760
        %1159 = vmatpush.msra.mxu0 %v1158
        %v1160 = vand.u32 %v834, 4294901760
        %1161 = vmatpush.msra.mxu0 %v1160
        %v1162 = vand.u32 %v833, 4294901760
        %1163 = vmatpush.msra.mxu0 %v1162
        %v1164 = vand.u32 %v832, 4294901760
        %1165 = vmatpush.msra.mxu0 %v1164
        %v1166 = vand.u32 %v831, 4294901760
        %1167 = vmatpush.msra.mxu0 %v1166
        %v1168 = vand.u32 %v830, 4294901760
        %1169 = vmatpush.msra.mxu0 %v1168
        %v1170 = vand.u32 %v829, 4294901760
        %1171 = vmatpush.msra.mxu0 %v1170
        %v1172 = vand.u32 %v828, 4294901760
        %1173 = vmatpush.msra.mxu0 %v1172
        %v1174 = vand.u32 %v827, 4294901760
        %1175 = vmatpush.msra.mxu0 %v1174
        %v1176 = vand.u32 %v826, 4294901760
        %1177 = vmatpush.msra.mxu0 %v1176
        %v1178 = vand.u32 %v307, 4294901760
        %1179 = vmatmul.f32.gmra.mxu0 %v1178
        %v1180 = vpop.f32.mrf.mxu0
        %v1181 = vadd.f32 %v1144, %v1180
        %1182 = vdwg.mxu0
        %v1183 = vmul.f32 %v307, %v587
        %v1184 = vmul.f32 %v1181, %v824
        %v1185 = vadd.f32 %v1183, %v1184
        %1186 = vst [vmem:[%s306] sm:$0x3] %v1185
        %s1187 = sand.u32 %s145, 1
        %s1188 = scalar_lea.sflag [#allocation4], %s1187
        %s1189 = sand.u32 %s145, 1
        %s1190 = smul.addr %s1189, 2
        %s1191 = scalar_lea.vmem [#allocation10], %s1190
        // Predicated region
        $region53: #{tpu_custom_call.1} parent=35 // pred_check
          %p1192 = pneg %p155
        $region54: #{tpu_custom_call.1} parent=35 // pred_check_branch
          %1194 = sbr.rel (%p1192) target = $region56
        $region55: #{tpu_custom_call.1} parent=35 // pred_region
          %1196 = vsyncadd %s1188, 0
          %s1197 = sadd.s32 %s29, %s30
          %s1198 = smul.addr %s1197, 2
          %s1199 = scalar_lea.hbm %s4, %s1198
          %s1201 = sshll.u32 %s1191, 4
          %s1202 = int_to_ptr.vmem [resolvable:$true] %s1201
          %s1203 = sshll.u32 %s1199, 4
          %s1204 = int_to_ptr.hbm [resolvable:$true] %s1203
          %1206 = dma.vmem_to_hbm [thread:$0]  %s1202, 32, %s1204, %s1188
        $region56: #{tpu_custom_call.1} parent=35 // pred_fallthru
          _
      $region36: #{tpu_custom_call.1} parent=5 // pred_fallthru
        _
      %p1207 = scmp.le.s32.totalorder 2, %s20
      // Predicated region
      $region57: #{tpu_custom_call.1} parent=5 // pred_check
        %p1208 = pneg %p1207
      $region58: #{tpu_custom_call.1} parent=5 // pred_check_branch
        %1210 = sbr.rel (%p1208) target = $region60
      $region59: #{tpu_custom_call.1} parent=5 // pred_region
        %s1211 = ssub.s32 %s20, 2
        // Predicated region
        $region61: #{tpu_custom_call.1} parent=59 // pred_check
          %p1212 = pneg %p161
        $region62: #{tpu_custom_call.1} parent=59 // pred_check_branch
          %1214 = sbr.rel (%p1212) target = $region64
        $region63: #{tpu_custom_call.1} parent=59 // pred_region
          %s1215 = sand.u32 %s146, 1
          %s1216 = scalar_lea.sflag [#allocation4], %s1215
          %s1217 = sand.u32 %s146, 1
          %s1218 = smul.addr %s1217, 2
          %s1219 = scalar_lea.vmem [#allocation10], %s1218
          %1221 = dma.done %s1216, 32
        $region64: #{tpu_custom_call.1} parent=59 // pred_fallthru
          _
      $region60: #{tpu_custom_call.1} parent=5 // pred_fallthru
        _
    $region6: #{tpu_custom_call.1} parent=1 // loop_footer
      %s24 = sadd.s32 1, %s20
    $region7: #{tpu_custom_call.1} parent=1 // loop_footer_branch
      %19 = sbr.rel target = $region3
    $region8: #{tpu_custom_call.1} parent=1 // loop_exit
      _
    %1222 = vsyncpa [#allocation3], 1
    %s1223 = scalar_lea.sflag [#allocation3], 1
    %1224 = vsyncpa %s1223, 1
    %1225 = vsyncpa [#allocation6], 1
    %s1226 = scalar_lea.sflag [#allocation6], 1
    %1227 = vsyncpa %s1226, 1
    %1228 = vsyncpa [#allocation9], 1
    %1229 = vsyncpa [#allocation4], 1
    %s1230 = scalar_lea.sflag [#allocation4], 1
    %1231 = vsyncpa %s1230, 1

</llo_original>
